<compile_context>
chip_gen: v7x
topology: tpu7x:2x2x1
jax: 0.10.0
libtpu: 0.0.40
codegen_flags: <defaults>
</compile_context>

<pallas_src>
import jax
import jax.numpy as jnp
from jax.experimental import pallas as pl
from jax.experimental.pallas import tpu as pltpu


def _round_up(n, m):
    return ((n + m - 1) // m) * m


def _mish(x):
    # mish(x) = x * tanh(softplus(x))
    # Stable single-exp form: with t = exp(-|x|), u = 1 + t,
    #   x >= 0: tanh(softplus(x)) = (u^2 - t^2) / (u^2 + t^2)
    #   x <  0: tanh(softplus(x)) = (u^2 - 1)   / (u^2 + 1)
    # Divide done via EUP approx reciprocal (free slot; within tolerance).
    t = jnp.exp(-jnp.abs(x))
    u = 1.0 + t
    a = jnp.where(x >= 0, t * t, 1.0)
    u2 = u * u
    tanh_sp = (u2 - a) * pl.reciprocal(u2 + a, approx=True)
    return x * tanh_sp


def _layernorm(x, gamma, beta, eps=1e-5):
    # Two-pass LayerNorm (matches PyTorch nn.LayerNorm numerics more closely
    # than the E[x^2]-mean^2 form).
    mean = jnp.mean(x, axis=-1, keepdims=True)
    xc = x - mean
    var = jnp.mean(xc * xc, axis=-1, keepdims=True)
    inv = jax.lax.rsqrt(var + eps)
    return xc * inv * gamma + beta


def actor_net_kernel(x_ref,
                     w1_ref, b1_ref, g1_ref, be1_ref,
                     w2_ref, b2_ref, g2_ref, be2_ref,
                     w3_ref, b3_ref,
                     o_ref):
    # f32 read from HBM, bf16 cast in-kernel (halves input-side HBM traffic
    # vs. a standalone cast kernel).
    x = x_ref[...].astype(jnp.bfloat16)  # (TB, D)

    # --- NormedLinear 1: Linear -> LayerNorm -> Mish ---
    h = jnp.dot(x, w1_ref[...], preferred_element_type=jnp.float32) + b1_ref[...]
    h = _mish(_layernorm(h, g1_ref[...], be1_ref[...]))

    # --- NormedLinear 2: Linear -> LayerNorm -> Mish ---
    h = jnp.dot(h.astype(jnp.bfloat16), w2_ref[...],
                preferred_element_type=jnp.float32) + b2_ref[...]
    h = _mish(_layernorm(h, g2_ref[...], be2_ref[...]))

    # --- Final Linear: latent_size -> padded (lane-dense) 2*action_size ---
    out = jnp.dot(h.astype(jnp.bfloat16), w3_ref[...],
                  preferred_element_type=jnp.float32) + b3_ref[...]

    # bf16, unmasked full-width (128-lane) store.
    o_ref[...] = out.astype(o_ref.dtype)


def prepare_params(params):
    """One-time weight preparation (hoisted out of the per-call path).

    Casts matmul weights to bf16 and zero-pads the final layer to a
    lane-dense 128-wide output.  Call once; reuse the result every forward.
    """
    out_dim = params["w3"].shape[1]
    out_pad = _round_up(max(out_dim, 128), 128)
    pad = out_pad - out_dim
    return {
        "w1": params["w1"].astype(jnp.bfloat16),
        "b1": params["b1"], "g1": params["g1"], "be1": params["be1"],
        "w2": params["w2"].astype(jnp.bfloat16),
        "b2": params["b2"], "g2": params["g2"], "be2": params["be2"],
        "w3": jnp.pad(params["w3"], ((0, 0), (0, pad))).astype(jnp.bfloat16),
        "b3": jnp.pad(params["b3"], ((0, 0), (0, pad))),
        "out_dim": out_dim,
    }


def actor_net_forward(x, prepped):
    """x: (B, latent_size) float32.  prepped: output of prepare_params().
    Returns (B, 2*action_size) float32."""
    B, D = x.shape
    out_dim = prepped["out_dim"]
    out_pad = prepped["w3"].shape[1]

    # Batch tile: up to 512 rows per grid step, 16-row aligned (bf16 pack).
    TB = min(512, _round_up(B, 16))
    grid = (pl.cdiv(B, TB),)  # Pallas masks the ragged last block.

    row = lambda i: (i, 0)      # batch-tiled arrays
    const = lambda i: (0, 0)    # weights/params resident across the grid

    out = pl.pallas_call(
        actor_net_kernel,
        out_shape=jax.ShapeDtypeStruct((B, out_pad), jnp.bfloat16),
        grid=grid,
        in_specs=[
            pl.BlockSpec((TB, D), row),          # x (f32)
            pl.BlockSpec((D, D), const),         # w1 (bf16)
            pl.BlockSpec((1, D), const),         # b1
            pl.BlockSpec((1, D), const),         # g1
            pl.BlockSpec((1, D), const),         # be1
            pl.BlockSpec((D, D), const),         # w2 (bf16)
            pl.BlockSpec((1, D), const),         # b2
            pl.BlockSpec((1, D), const),         # g2
            pl.BlockSpec((1, D), const),         # be2
            pl.BlockSpec((D, out_pad), const),   # w3 (bf16, zero-padded)
            pl.BlockSpec((1, out_pad), const),   # b3 (zero-padded)
        ],
        out_specs=pl.BlockSpec((TB, out_pad), row),
        compiler_params=pltpu.CompilerParams(
            dimension_semantics=("parallel",)),
    )(x, prepped["w1"], prepped["b1"], prepped["g1"], prepped["be1"],
      prepped["w2"], prepped["b2"], prepped["g2"], prepped["be2"],
      prepped["w3"], prepped["b3"])

    # Slice away lane padding; restore f32 for module-fidelity output.
    return out[:, :out_dim].astype(jnp.float32)


def init_params(key, latent_size, action_size):
    """Deterministic synthetic parameter init (matches module shapes)."""
    ks = jax.random.split(key, 6)
    scale1 = 1.0 / jnp.sqrt(latent_size)
    return {
        # Linear weights stored transposed: (in, out)
        "w1": jax.random.normal(ks[0], (latent_size, latent_size), jnp.float32) * scale1,
        "b1": jax.random.normal(ks[1], (1, latent_size), jnp.float32) * 0.01,
        "g1": jnp.ones((1, latent_size), jnp.float32),
        "be1": jnp.zeros((1, latent_size), jnp.float32),
        "w2": jax.random.normal(ks[2], (latent_size, latent_size), jnp.float32) * scale1,
        "b2": jax.random.normal(ks[3], (1, latent_size), jnp.float32) * 0.01,
        "g2": jnp.ones((1, latent_size), jnp.float32),
        "be2": jnp.zeros((1, latent_size), jnp.float32),
        "w3": jax.random.normal(ks[4], (latent_size, 2 * action_size), jnp.float32) * scale1,
        "b3": jax.random.normal(ks[5], (1, 2 * action_size), jnp.float32) * 0.01,
    }


def reference_forward(x, p):
    """Pure-JAX reference mirroring the kernel's matmul precision
    (bf16 dot operands, f32 accumulation / elementwise math)."""
    def ln(h, g, be):
        mean = h.mean(-1, keepdims=True)
        hc = h - mean
        var = (hc * hc).mean(-1, keepdims=True)
        return hc * jax.lax.rsqrt(var + 1e-5) * g + be

    def mish(h):
        return h * jnp.tanh(jax.nn.softplus(h))

    h = jnp.dot(x.astype(jnp.bfloat16), p["w1"].astype(jnp.bfloat16),
                preferred_element_type=jnp.float32) + p["b1"]
    h = mish(ln(h, p["g1"], p["be1"]))
    h = jnp.dot(h.astype(jnp.bfloat16), p["w2"].astype(jnp.bfloat16),
                preferred_element_type=jnp.float32) + p["b2"]
    h = mish(ln(h, p["g2"], p["be2"]))
    return jnp.dot(h.astype(jnp.bfloat16), p["w3"].astype(jnp.bfloat16),
                   preferred_element_type=jnp.float32) + p["b3"]


if __name__ == "__main__":
    latent_size = 128
    action_size = 8
    batch = 8

    key = jax.random.PRNGKey(0)
    kx, kp = jax.random.split(key)
    x = jax.random.normal(kx, (batch, latent_size), jnp.float32)
    params = init_params(kp, latent_size, action_size)

    # One-time weight prep (bf16 cast + lane padding) — not on the call path.
    prepped = prepare_params(params)

    out = actor_net_forward(x, prepped)
    out = jax.block_until_ready(out)

    ref = reference_forward(x, params)
    assert out.shape == (batch, 2 * action_size)
    # Tolerance covers bf16 matmul operands, bf16 output quantization,
    # approx-reciprocal Mish, and the single-exp Mish form vs softplus/tanh.
    assert jnp.allclose(out, ref, atol=2e-2, rtol=2e-2), "mismatch vs reference"

    print("KERNEL_OK")
</pallas_src>

<mosaic_0001>
module attributes {stable_mosaic.version = 11 : i64} {
  func.func @actor_net_kernel(%arg0: i32, %arg1: memref<16x128xf32, #tpu.memory_space<vmem>>, %arg2: memref<128x128xbf16, #tpu.memory_space<vmem>>, %arg3: memref<1x128xf32, #tpu.memory_space<vmem>>, %arg4: memref<1x128xf32, #tpu.memory_space<vmem>>, %arg5: memref<1x128xf32, #tpu.memory_space<vmem>>, %arg6: memref<128x128xbf16, #tpu.memory_space<vmem>>, %arg7: memref<1x128xf32, #tpu.memory_space<vmem>>, %arg8: memref<1x128xf32, #tpu.memory_space<vmem>>, %arg9: memref<1x128xf32, #tpu.memory_space<vmem>>, %arg10: memref<128x128xbf16, #tpu.memory_space<vmem>>, %arg11: memref<1x128xf32, #tpu.memory_space<vmem>>, %arg12: memref<16x128xbf16, #tpu.memory_space<vmem>>) attributes {dimension_semantics = [#tpu.dimension_semantics<parallel>], iteration_bounds = array<i64: 1>, scalar_prefetch = 0 : i64, scratch_operands = 0 : i64, tpu.core_type = #tpu.core_type<tc>, window_params = [{transform_indices = @transform_0, window_bounds = array<i64: 16, 128>}, {pipeline_mode = #tpu.pipeline_mode<synchronous>, transform_indices = @transform_1, window_bounds = array<i64: 128, 128>}, {pipeline_mode = #tpu.pipeline_mode<synchronous>, transform_indices = @transform_2, window_bounds = array<i64: 1, 128>}, {pipeline_mode = #tpu.pipeline_mode<synchronous>, transform_indices = @transform_3, window_bounds = array<i64: 1, 128>}, {pipeline_mode = #tpu.pipeline_mode<synchronous>, transform_indices = @transform_4, window_bounds = array<i64: 1, 128>}, {pipeline_mode = #tpu.pipeline_mode<synchronous>, transform_indices = @transform_5, window_bounds = array<i64: 128, 128>}, {pipeline_mode = #tpu.pipeline_mode<synchronous>, transform_indices = @transform_6, window_bounds = array<i64: 1, 128>}, {pipeline_mode = #tpu.pipeline_mode<synchronous>, transform_indices = @transform_7, window_bounds = array<i64: 1, 128>}, {pipeline_mode = #tpu.pipeline_mode<synchronous>, transform_indices = @transform_8, window_bounds = array<i64: 1, 128>}, {pipeline_mode = #tpu.pipeline_mode<synchronous>, transform_indices = @transform_9, window_bounds = array<i64: 128, 128>}, {pipeline_mode = #tpu.pipeline_mode<synchronous>, transform_indices = @transform_10, window_bounds = array<i64: 1, 128>}, {transform_indices = @transform_11, window_bounds = array<i64: 16, 128>}]} {
    %c0 = arith.constant 0 : index
    %c0_0 = arith.constant 0 : index
    %0 = vector.load %arg1[%c0, %c0_0] : memref<16x128xf32, #tpu.memory_space<vmem>>, vector<16x128xf32>
    %1 = arith.truncf %0 : vector<16x128xf32> to vector<16x128xbf16>
    %c0_1 = arith.constant 0 : index
    %c0_2 = arith.constant 0 : index
    %2 = vector.load %arg2[%c0_1, %c0_2] : memref<128x128xbf16, #tpu.memory_space<vmem>>, vector<128x128xbf16>
    %cst = arith.constant dense<0.000000e+00> : vector<16x128xf32>
    %3 = tpu.matmul %1, %2, %cst {dimension_numbers = #tpu.dot_dimension_numbers<[1], [0], [0], [1], [0, 0, 1, 1], [], []>} : vector<16x128xbf16>, vector<128x128xbf16>, vector<16x128xf32> -> vector<16x128xf32>
    %c0_3 = arith.constant 0 : index
    %c0_4 = arith.constant 0 : index
    %4 = vector.load %arg3[%c0_3, %c0_4] : memref<1x128xf32, #tpu.memory_space<vmem>>, vector<1x128xf32>
    %5 = vector.broadcast %4 : vector<1x128xf32> to vector<16x128xf32>
    %6 = arith.addf %3, %5 : vector<16x128xf32>
    %c0_5 = arith.constant 0 : index
    %c0_6 = arith.constant 0 : index
    %7 = vector.load %arg4[%c0_5, %c0_6] : memref<1x128xf32, #tpu.memory_space<vmem>>, vector<1x128xf32>
    %c0_7 = arith.constant 0 : index
    %c0_8 = arith.constant 0 : index
    %8 = vector.load %arg5[%c0_7, %c0_8] : memref<1x128xf32, #tpu.memory_space<vmem>>, vector<1x128xf32>
    %cst_9 = arith.constant dense<0.000000e+00> : vector<16xf32>
    %9 = vector.multi_reduction <add>, %6, %cst_9 [1] : vector<16x128xf32> to vector<16xf32>
    %10 = vector.shape_cast %9 : vector<16xf32> to vector<16x1xf32>
    %cst_10 = arith.constant 1.280000e+02 : f32
    %11 = vector.broadcast %cst_10 : f32 to vector<16x1xf32>
    %12 = arith.divf %10, %11 : vector<16x1xf32>
    %13 = vector.broadcast %12 : vector<16x1xf32> to vector<16x128xf32>
    %14 = arith.subf %6, %13 : vector<16x128xf32>
    %15 = arith.mulf %14, %14 : vector<16x128xf32>
    %cst_11 = arith.constant dense<0.000000e+00> : vector<16xf32>
    %16 = vector.multi_reduction <add>, %15, %cst_11 [1] : vector<16x128xf32> to vector<16xf32>
    %17 = vector.shape_cast %16 : vector<16xf32> to vector<16x1xf32>
    %cst_12 = arith.constant 1.280000e+02 : f32
    %18 = vector.broadcast %cst_12 : f32 to vector<16x1xf32>
    %19 = arith.divf %17, %18 : vector<16x1xf32>
    %cst_13 = arith.constant 9.99999974E-6 : f32
    %20 = vector.broadcast %cst_13 : f32 to vector<16x1xf32>
    %21 = arith.addf %19, %20 : vector<16x1xf32>
    %22 = math.rsqrt %21 : vector<16x1xf32>
    %23 = vector.broadcast %22 : vector<16x1xf32> to vector<16x128xf32>
    %24 = arith.mulf %14, %23 : vector<16x128xf32>
    %25 = vector.broadcast %7 : vector<1x128xf32> to vector<16x128xf32>
    %26 = arith.mulf %24, %25 : vector<16x128xf32>
    %27 = vector.broadcast %8 : vector<1x128xf32> to vector<16x128xf32>
    %28 = arith.addf %26, %27 : vector<16x128xf32>
    %29 = math.absf %28 : vector<16x128xf32>
    %cst_14 = arith.constant 0.000000e+00 : f32
    %30 = vector.broadcast %cst_14 : f32 to vector<16x128xf32>
    %31 = arith.subf %30, %29 : vector<16x128xf32>
    %32 = math.exp %31 : vector<16x128xf32>
    %cst_15 = arith.constant 1.000000e+00 : f32
    %33 = vector.broadcast %cst_15 : f32 to vector<16x128xf32>
    %34 = arith.addf %33, %32 : vector<16x128xf32>
    %cst_16 = arith.constant 0.000000e+00 : f32
    %35 = vector.broadcast %cst_16 : f32 to vector<16x128xf32>
    %36 = arith.cmpf oge, %28, %35 : vector<16x128xf32>
    %37 = arith.mulf %32, %32 : vector<16x128xf32>
    %cst_17 = arith.constant 1.000000e+00 : f32
    %38 = vector.broadcast %cst_17 : f32 to vector<16x128xf32>
    %39 = arith.select %36, %37, %38 : vector<16x128xi1>, vector<16x128xf32>
    %40 = arith.mulf %34, %34 : vector<16x128xf32>
    %41 = arith.subf %40, %39 : vector<16x128xf32>
    %42 = arith.addf %40, %39 : vector<16x128xf32>
    %43 = tpu.reciprocal %42 {approx = true} : vector<16x128xf32> -> vector<16x128xf32>
    %44 = arith.mulf %41, %43 : vector<16x128xf32>
    %45 = arith.mulf %28, %44 : vector<16x128xf32>
    %46 = arith.truncf %45 : vector<16x128xf32> to vector<16x128xbf16>
    %c0_18 = arith.constant 0 : index
    %c0_19 = arith.constant 0 : index
    %47 = vector.load %arg6[%c0_18, %c0_19] : memref<128x128xbf16, #tpu.memory_space<vmem>>, vector<128x128xbf16>
    %cst_20 = arith.constant dense<0.000000e+00> : vector<16x128xf32>
    %48 = tpu.matmul %46, %47, %cst_20 {dimension_numbers = #tpu.dot_dimension_numbers<[1], [0], [0], [1], [0, 0, 1, 1], [], []>} : vector<16x128xbf16>, vector<128x128xbf16>, vector<16x128xf32> -> vector<16x128xf32>
    %c0_21 = arith.constant 0 : index
    %c0_22 = arith.constant 0 : index
    %49 = vector.load %arg7[%c0_21, %c0_22] : memref<1x128xf32, #tpu.memory_space<vmem>>, vector<1x128xf32>
    %50 = vector.broadcast %49 : vector<1x128xf32> to vector<16x128xf32>
    %51 = arith.addf %48, %50 : vector<16x128xf32>
    %c0_23 = arith.constant 0 : index
    %c0_24 = arith.constant 0 : index
    %52 = vector.load %arg8[%c0_23, %c0_24] : memref<1x128xf32, #tpu.memory_space<vmem>>, vector<1x128xf32>
    %c0_25 = arith.constant 0 : index
    %c0_26 = arith.constant 0 : index
    %53 = vector.load %arg9[%c0_25, %c0_26] : memref<1x128xf32, #tpu.memory_space<vmem>>, vector<1x128xf32>
    %cst_27 = arith.constant dense<0.000000e+00> : vector<16xf32>
    %54 = vector.multi_reduction <add>, %51, %cst_27 [1] : vector<16x128xf32> to vector<16xf32>
    %55 = vector.shape_cast %54 : vector<16xf32> to vector<16x1xf32>
    %cst_28 = arith.constant 1.280000e+02 : f32
    %56 = vector.broadcast %cst_28 : f32 to vector<16x1xf32>
    %57 = arith.divf %55, %56 : vector<16x1xf32>
    %58 = vector.broadcast %57 : vector<16x1xf32> to vector<16x128xf32>
    %59 = arith.subf %51, %58 : vector<16x128xf32>
    %60 = arith.mulf %59, %59 : vector<16x128xf32>
    %cst_29 = arith.constant dense<0.000000e+00> : vector<16xf32>
    %61 = vector.multi_reduction <add>, %60, %cst_29 [1] : vector<16x128xf32> to vector<16xf32>
    %62 = vector.shape_cast %61 : vector<16xf32> to vector<16x1xf32>
    %cst_30 = arith.constant 1.280000e+02 : f32
    %63 = vector.broadcast %cst_30 : f32 to vector<16x1xf32>
    %64 = arith.divf %62, %63 : vector<16x1xf32>
    %cst_31 = arith.constant 9.99999974E-6 : f32
    %65 = vector.broadcast %cst_31 : f32 to vector<16x1xf32>
    %66 = arith.addf %64, %65 : vector<16x1xf32>
    %67 = math.rsqrt %66 : vector<16x1xf32>
    %68 = vector.broadcast %67 : vector<16x1xf32> to vector<16x128xf32>
    %69 = arith.mulf %59, %68 : vector<16x128xf32>
    %70 = vector.broadcast %52 : vector<1x128xf32> to vector<16x128xf32>
    %71 = arith.mulf %69, %70 : vector<16x128xf32>
    %72 = vector.broadcast %53 : vector<1x128xf32> to vector<16x128xf32>
    %73 = arith.addf %71, %72 : vector<16x128xf32>
    %74 = math.absf %73 : vector<16x128xf32>
    %cst_32 = arith.constant 0.000000e+00 : f32
    %75 = vector.broadcast %cst_32 : f32 to vector<16x128xf32>
    %76 = arith.subf %75, %74 : vector<16x128xf32>
    %77 = math.exp %76 : vector<16x128xf32>
    %cst_33 = arith.constant 1.000000e+00 : f32
    %78 = vector.broadcast %cst_33 : f32 to vector<16x128xf32>
    %79 = arith.addf %78, %77 : vector<16x128xf32>
    %cst_34 = arith.constant 0.000000e+00 : f32
    %80 = vector.broadcast %cst_34 : f32 to vector<16x128xf32>
    %81 = arith.cmpf oge, %73, %80 : vector<16x128xf32>
    %82 = arith.mulf %77, %77 : vector<16x128xf32>
    %cst_35 = arith.constant 1.000000e+00 : f32
    %83 = vector.broadcast %cst_35 : f32 to vector<16x128xf32>
    %84 = arith.select %81, %82, %83 : vector<16x128xi1>, vector<16x128xf32>
    %85 = arith.mulf %79, %79 : vector<16x128xf32>
    %86 = arith.subf %85, %84 : vector<16x128xf32>
    %87 = arith.addf %85, %84 : vector<16x128xf32>
    %88 = tpu.reciprocal %87 {approx = true} : vector<16x128xf32> -> vector<16x128xf32>
    %89 = arith.mulf %86, %88 : vector<16x128xf32>
    %90 = arith.mulf %73, %89 : vector<16x128xf32>
    %91 = arith.truncf %90 : vector<16x128xf32> to vector<16x128xbf16>
    %c0_36 = arith.constant 0 : index
    %c0_37 = arith.constant 0 : index
    %92 = vector.load %arg10[%c0_36, %c0_37] : memref<128x128xbf16, #tpu.memory_space<vmem>>, vector<128x128xbf16>
    %cst_38 = arith.constant dense<0.000000e+00> : vector<16x128xf32>
    %93 = tpu.matmul %91, %92, %cst_38 {dimension_numbers = #tpu.dot_dimension_numbers<[1], [0], [0], [1], [0, 0, 1, 1], [], []>} : vector<16x128xbf16>, vector<128x128xbf16>, vector<16x128xf32> -> vector<16x128xf32>
    %c0_39 = arith.constant 0 : index
    %c0_40 = arith.constant 0 : index
    %94 = vector.load %arg11[%c0_39, %c0_40] : memref<1x128xf32, #tpu.memory_space<vmem>>, vector<1x128xf32>
    %95 = vector.broadcast %94 : vector<1x128xf32> to vector<16x128xf32>
    %96 = arith.addf %93, %95 : vector<16x128xf32>
    %97 = arith.truncf %96 : vector<16x128xf32> to vector<16x128xbf16>
    %c0_41 = arith.constant 0 : index
    %c0_42 = arith.constant 0 : index
    %98 = vector.load %arg12[%c0_41, %c0_42] : memref<16x128xbf16, #tpu.memory_space<vmem>>, vector<16x128xbf16>
    tpu.vector_store %arg12[%c0_41, %c0_42], %97 {strides = array<i32>} : memref<16x128xbf16, #tpu.memory_space<vmem>>, vector<16x128xbf16>,
    return
  }
  func.func @transform_0(%arg0: i32) -> (i32, i32) {
    %c0_i32 = arith.constant 0 : i32
    %c0_i32_0 = arith.constant 0 : i32
    return %arg0, %c0_i32 : i32, i32
  }
  func.func @transform_1(%arg0: i32) -> (i32, i32) {
    %c0_i32 = arith.constant 0 : i32
    %c0_i32_0 = arith.constant 0 : i32
    %c0_i32_1 = arith.constant 0 : i32
    return %c0_i32, %c0_i32_0 : i32, i32
  }
  func.func @transform_2(%arg0: i32) -> (i32, i32) {
    %c0_i32 = arith.constant 0 : i32
    %c0_i32_0 = arith.constant 0 : i32
    %c0_i32_1 = arith.constant 0 : i32
    return %c0_i32, %c0_i32_0 : i32, i32
  }
  func.func @transform_3(%arg0: i32) -> (i32, i32) {
    %c0_i32 = arith.constant 0 : i32
    %c0_i32_0 = arith.constant 0 : i32
    %c0_i32_1 = arith.constant 0 : i32
    return %c0_i32, %c0_i32_0 : i32, i32
  }
  func.func @transform_4(%arg0: i32) -> (i32, i32) {
    %c0_i32 = arith.constant 0 : i32
    %c0_i32_0 = arith.constant 0 : i32
    %c0_i32_1 = arith.constant 0 : i32
    return %c0_i32, %c0_i32_0 : i32, i32
  }
  func.func @transform_5(%arg0: i32) -> (i32, i32) {
    %c0_i32 = arith.constant 0 : i32
    %c0_i32_0 = arith.constant 0 : i32
    %c0_i32_1 = arith.constant 0 : i32
    return %c0_i32, %c0_i32_0 : i32, i32
  }
  func.func @transform_6(%arg0: i32) -> (i32, i32) {
    %c0_i32 = arith.constant 0 : i32
    %c0_i32_0 = arith.constant 0 : i32
    %c0_i32_1 = arith.constant 0 : i32
    return %c0_i32, %c0_i32_0 : i32, i32
  }
  func.func @transform_7(%arg0: i32) -> (i32, i32) {
    %c0_i32 = arith.constant 0 : i32
    %c0_i32_0 = arith.constant 0 : i32
    %c0_i32_1 = arith.constant 0 : i32
    return %c0_i32, %c0_i32_0 : i32, i32
  }
  func.func @transform_8(%arg0: i32) -> (i32, i32) {
    %c0_i32 = arith.constant 0 : i32
    %c0_i32_0 = arith.constant 0 : i32
    %c0_i32_1 = arith.constant 0 : i32
    return %c0_i32, %c0_i32_0 : i32, i32
  }
  func.func @transform_9(%arg0: i32) -> (i32, i32) {
    %c0_i32 = arith.constant 0 : i32
    %c0_i32_0 = arith.constant 0 : i32
    %c0_i32_1 = arith.constant 0 : i32
    return %c0_i32, %c0_i32_0 : i32, i32
  }
  func.func @transform_10(%arg0: i32) -> (i32, i32) {
    %c0_i32 = arith.constant 0 : i32
    %c0_i32_0 = arith.constant 0 : i32
    %c0_i32_1 = arith.constant 0 : i32
    return %c0_i32, %c0_i32_0 : i32, i32
  }
  func.func @transform_11(%arg0: i32) -> (i32, i32) {
    %c0_i32 = arith.constant 0 : i32
    %c0_i32_0 = arith.constant 0 : i32
    return %arg0, %c0_i32 : i32, i32
  }
}

</mosaic_0001>

<llo_original>
// kernel: tpu_custom_call.1
$region0: #{tpu_custom_call.1}
  #allocation0 [shape = 'u32[]', space=smem, size = 0x4, offset = 0x4, fixed_abs, tag = 'smem constant byte address 0x4 - core index']
  #allocation1 [shape = 'u32[144,128]{1,0:T(1,128)}', space=vmem, size = 0x12000, scoped, tag = 'internal scratch']
  %s0 = inlined_call_operand.hbm [shape: f32[8,128], index: 0, kind: input, shape index: {}]
  %s1 = inlined_call_operand.hbm [shape: bf16[128,128], index: 1, kind: input, shape index: {}]
  %s2 = inlined_call_operand.vmem [shape: f32[1,128], index: 2, kind: input, shape index: {}]
  %s3 = inlined_call_operand.vmem [shape: f32[1,128], index: 3, kind: input, shape index: {}]
  %s4 = inlined_call_operand.vmem [shape: f32[1,128], index: 4, kind: input, shape index: {}]
  %s5 = inlined_call_operand.hbm [shape: bf16[128,128], index: 5, kind: input, shape index: {}]
  %s6 = inlined_call_operand.vmem [shape: f32[1,128], index: 6, kind: input, shape index: {}]
  %s7 = inlined_call_operand.vmem [shape: f32[1,128], index: 7, kind: input, shape index: {}]
  %s8 = inlined_call_operand.vmem [shape: f32[1,128], index: 8, kind: input, shape index: {}]
  %s9 = inlined_call_operand.hbm [shape: bf16[128,128], index: 9, kind: input, shape index: {}]
  %s10 = inlined_call_operand.vmem [shape: f32[1,128], index: 10, kind: input, shape index: {}]
  %s11 = inlined_call_operand.hbm [shape: bf16[8,128], index: 11, kind: output, shape index: {}]
  %s12 = sld [smem:[#allocation0]]
  $region70: #{tpu_custom_call.1} parent=0
    _
  %s14 = ssub.s32 1, %s12
  %s15 = scalar_select 0, %s14, %s12
  $region1: #{tpu_custom_call.1} parent=0
    #allocation2 [shape = 'u8[8192]{0}', space=vmem, size = 0x2000, scoped, tag = 'input window, operand 0, single buffered']
    #allocation3 [shape = 's32[1]{0}', space=sflag, size = 0x4, scoped, tag = 'scoped memory for tpu_custom_call.1']
    #allocation4 [shape = 's32[1]{0}', space=sflag, size = 0x4, scoped, tag = 'scoped memory for tpu_custom_call.1']
    #allocation5 [shape = 'u8[32768]{0}', space=vmem, size = 0x8000, scoped, tag = 'input window, operand 1, single buffered']
    #allocation6 [shape = 's32[1]{0}', space=sflag, size = 0x4, scoped, tag = 'scoped memory for tpu_custom_call.1']
    #allocation7 [shape = 'u8[32768]{0}', space=vmem, size = 0x8000, scoped, tag = 'input window, operand 5, single buffered']
    #allocation8 [shape = 'u8[32768]{0}', space=vmem, size = 0x8000, scoped, tag = 'input window, operand 9, single buffered']
    #allocation9 [shape = 's32[1]{0}', space=sflag, size = 0x4, scoped, tag = 'scoped memory for tpu_custom_call.1']
    #allocation10 [shape = 'u8[4096]{0}', space=vmem, size = 0x1000, scoped, tag = 'output window, operand 0, single buffered']
    %16 = vsyncpa [#allocation3], 0
    %17 = vsyncpa [#allocation6], 0
    %18 = vsyncpa [#allocation9], 0
    %19 = vsyncpa [#allocation4], 0
    // Predicated region
    $region2: #{tpu_custom_call.1} parent=1 // pred_check
      _
    $region3: #{tpu_custom_call.1} parent=1 // pred_check_branch
      %21 = sbr.rel (0) target = $region5
    $region4: #{tpu_custom_call.1} parent=1 // pred_region
      %s23 = ssub.s32 256, 128
      %24 = vsyncadd [#allocation3], %s23
      %s25 = sshll.u32 [#allocation2], 4
      %s26 = int_to_ptr.vmem [resolvable:$true] %s25
      %31 = dma.hbm_to_vmem [thread:$0]  %s0, 128, %s26, [#allocation3], 128, 128, 8
    $region5: #{tpu_custom_call.1} parent=1 // pred_fallthru
      _
    // Predicated region
    $region6: #{tpu_custom_call.1} parent=1 // pred_check
      _
    $region7: #{tpu_custom_call.1} parent=1 // pred_check_branch
      %33 = sbr.rel (0) target = $region9
    $region8: #{tpu_custom_call.1} parent=1 // pred_region
      %s35 = ssub.s32 1024, 1024
      %36 = vsyncadd [#allocation6], %s35
      %s37 = sshll.u32 [#allocation5], 4
      %s38 = int_to_ptr.vmem [resolvable:$true] %s37
      %43 = dma.hbm_to_vmem [thread:$0]  %s1, 1024, %s38, [#allocation6], 64, 64, 4
    $region9: #{tpu_custom_call.1} parent=1 // pred_fallthru
      _
    // Predicated region
    $region10: #{tpu_custom_call.1} parent=1 // pred_check
      _
    $region11: #{tpu_custom_call.1} parent=1 // pred_check_branch
      %45 = sbr.rel (0) target = $region13
    $region12: #{tpu_custom_call.1} parent=1 // pred_region
      _
    $region13: #{tpu_custom_call.1} parent=1 // pred_fallthru
      _
    // Predicated region
    $region14: #{tpu_custom_call.1} parent=1 // pred_check
      _
    $region15: #{tpu_custom_call.1} parent=1 // pred_check_branch
      %47 = sbr.rel (0) target = $region17
    $region16: #{tpu_custom_call.1} parent=1 // pred_region
      _
    $region17: #{tpu_custom_call.1} parent=1 // pred_fallthru
      _
    // Predicated region
    $region18: #{tpu_custom_call.1} parent=1 // pred_check
      _
    $region19: #{tpu_custom_call.1} parent=1 // pred_check_branch
      %49 = sbr.rel (0) target = $region21
    $region20: #{tpu_custom_call.1} parent=1 // pred_region
      _
    $region21: #{tpu_custom_call.1} parent=1 // pred_fallthru
      _
    // Predicated region
    $region22: #{tpu_custom_call.1} parent=1 // pred_check
      _
    $region23: #{tpu_custom_call.1} parent=1 // pred_check_branch
      %51 = sbr.rel (0) target = $region25
    $region24: #{tpu_custom_call.1} parent=1 // pred_region
      %s53 = ssub.s32 1024, 1024
      %54 = vsyncadd [#allocation6], %s53
      %s55 = sshll.u32 [#allocation7], 4
      %s56 = int_to_ptr.vmem [resolvable:$true] %s55
      %61 = dma.hbm_to_vmem [thread:$0]  %s5, 1024, %s56, [#allocation6], 64, 64, 4
    $region25: #{tpu_custom_call.1} parent=1 // pred_fallthru
      _
    // Predicated region
    $region26: #{tpu_custom_call.1} parent=1 // pred_check
      _
    $region27: #{tpu_custom_call.1} parent=1 // pred_check_branch
      %63 = sbr.rel (0) target = $region29
    $region28: #{tpu_custom_call.1} parent=1 // pred_region
      _
    $region29: #{tpu_custom_call.1} parent=1 // pred_fallthru
      _
    // Predicated region
    $region30: #{tpu_custom_call.1} parent=1 // pred_check
      _
    $region31: #{tpu_custom_call.1} parent=1 // pred_check_branch
      %65 = sbr.rel (0) target = $region33
    $region32: #{tpu_custom_call.1} parent=1 // pred_region
      _
    $region33: #{tpu_custom_call.1} parent=1 // pred_fallthru
      _
    // Predicated region
    $region34: #{tpu_custom_call.1} parent=1 // pred_check
      _
    $region35: #{tpu_custom_call.1} parent=1 // pred_check_branch
      %67 = sbr.rel (0) target = $region37
    $region36: #{tpu_custom_call.1} parent=1 // pred_region
      _
    $region37: #{tpu_custom_call.1} parent=1 // pred_fallthru
      _
    // Predicated region
    $region38: #{tpu_custom_call.1} parent=1 // pred_check
      _
    $region39: #{tpu_custom_call.1} parent=1 // pred_check_branch
      %69 = sbr.rel (0) target = $region41
    $region40: #{tpu_custom_call.1} parent=1 // pred_region
      %s71 = ssub.s32 1024, 1024
      %72 = vsyncadd [#allocation9], %s71
      %s73 = sshll.u32 [#allocation8], 4
      %s74 = int_to_ptr.vmem [resolvable:$true] %s73
      %79 = dma.hbm_to_vmem [thread:$0]  %s9, 1024, %s74, [#allocation9], 64, 64, 4
    $region41: #{tpu_custom_call.1} parent=1 // pred_fallthru
      _
    // Predicated region
    $region42: #{tpu_custom_call.1} parent=1 // pred_check
      _
    $region43: #{tpu_custom_call.1} parent=1 // pred_check_branch
      %81 = sbr.rel (0) target = $region45
    $region44: #{tpu_custom_call.1} parent=1 // pred_region
      _
    $region45: #{tpu_custom_call.1} parent=1 // pred_fallthru
      _
    // Predicated region
    $region46: #{tpu_custom_call.1} parent=1 // pred_check
      _
    $region47: #{tpu_custom_call.1} parent=1 // pred_check_branch
      %83 = sbr.rel (0) target = $region49
    $region48: #{tpu_custom_call.1} parent=1 // pred_region
      %84 = dma.done [#allocation3], 256
    $region49: #{tpu_custom_call.1} parent=1 // pred_fallthru
      _
    // Predicated region
    $region50: #{tpu_custom_call.1} parent=1 // pred_check
      _
    $region51: #{tpu_custom_call.1} parent=1 // pred_check_branch
      %86 = sbr.rel (0) target = $region53
    $region52: #{tpu_custom_call.1} parent=1 // pred_region
      %87 = dma.done [#allocation6], 1024
    $region53: #{tpu_custom_call.1} parent=1 // pred_fallthru
      _
    // Predicated region
    $region54: #{tpu_custom_call.1} parent=1 // pred_check
      _
    $region55: #{tpu_custom_call.1} parent=1 // pred_check_branch
      %89 = sbr.rel (0) target = $region57
    $region56: #{tpu_custom_call.1} parent=1 // pred_region
      %90 = dma.done [#allocation6], 1024
    $region57: #{tpu_custom_call.1} parent=1 // pred_fallthru
      _
    // Predicated region
    $region58: #{tpu_custom_call.1} parent=1 // pred_check
      _
    $region59: #{tpu_custom_call.1} parent=1 // pred_check_branch
      %92 = sbr.rel (0) target = $region61
    $region60: #{tpu_custom_call.1} parent=1 // pred_region
      %93 = dma.done [#allocation9], 1024
    $region61: #{tpu_custom_call.1} parent=1 // pred_fallthru
      _
    %v95 = vld [vmem:[#allocation2] sm:$0xff]
    %v96 = vld [vmem:[#allocation2 + $0x8] sm:$0xff]
    %v97 = vpack.c.bf16 %v96, %v95
    %v98 = vld [vmem:[#allocation5] sm:$0xf]
    %v99 = vld [vmem:[#allocation5 + $0x4] sm:$0xf]
    %v100 = vld [vmem:[#allocation5 + $0x8] sm:$0xf]
    %v101 = vld [vmem:[#allocation5 + $0xc] sm:$0xf]
    %v102 = vld [vmem:[#allocation5 + $0x10] sm:$0xf]
    %v103 = vld [vmem:[#allocation5 + $0x14] sm:$0xf]
    %v104 = vld [vmem:[#allocation5 + $0x18] sm:$0xf]
    %v105 = vld [vmem:[#allocation5 + $0x1c] sm:$0xf]
    %v106 = vld [vmem:[#allocation5 + $0x20] sm:$0xf]
    %v107 = vld [vmem:[#allocation5 + $0x24] sm:$0xf]
    %v108 = vld [vmem:[#allocation5 + $0x28] sm:$0xf]
    %v109 = vld [vmem:[#allocation5 + $0x2c] sm:$0xf]
    %v110 = vld [vmem:[#allocation5 + $0x30] sm:$0xf]
    %v111 = vld [vmem:[#allocation5 + $0x34] sm:$0xf]
    %v112 = vld [vmem:[#allocation5 + $0x38] sm:$0xf]
    %v113 = vld [vmem:[#allocation5 + $0x3c] sm:$0xf]
    %v114 = vld [vmem:[%s2] sm:$0x1]
    %v116 = vlaneseq
    %v117 = vshrl.u32 %v116, 7
    %v118 = vsub.s32 0, %v117
    %v119 = vrot.slane %v114, %v118
    %v137 = vunpack.c.l.b16 %v98
    %v138 = vunpack.c.l.b16 %v99
    %v139 = vunpack.c.l.b16 %v100
    %v140 = vunpack.c.l.b16 %v101
    %v141 = vunpack.c.l.b16 %v102
    %v142 = vunpack.c.l.b16 %v103
    %v143 = vunpack.c.l.b16 %v104
    %v144 = vunpack.c.l.b16 %v105
    %v145 = vunpack.c.l.b16 %v106
    %v146 = vunpack.c.l.b16 %v107
    %v147 = vunpack.c.l.b16 %v108
    %v148 = vunpack.c.l.b16 %v109
    %v149 = vunpack.c.l.b16 %v110
    %v150 = vunpack.c.l.b16 %v111
    %v151 = vunpack.c.l.b16 %v112
    %v152 = vunpack.c.l.b16 %v113
    %v153 = vpack.c.b16 %v138, %v137
    %v154 = vpack.c.b16 %v140, %v139
    %v155 = vpack.c.b16 %v142, %v141
    %v156 = vpack.c.b16 %v144, %v143
    %v157 = vpack.c.b16 %v146, %v145
    %v158 = vpack.c.b16 %v148, %v147
    %v159 = vpack.c.b16 %v150, %v149
    %v160 = vpack.c.b16 %v152, %v151
    %169 = vmatprep.subr.bf16.mxu0 0
    %170 = vmatpush1.bf16.msra.mxu0 %v153
    %171 = vmatprep.subr.bf16.mxu0 0
    %172 = vmatpush1.bf16.msra.mxu0 %v154
    %173 = vmatprep.subr.bf16.mxu0 0
    %174 = vmatpush1.bf16.msra.mxu0 %v155
    %175 = vmatprep.subr.bf16.mxu0 0
    %176 = vmatpush1.bf16.msra.mxu0 %v156
    %177 = vmatprep.subr.bf16.mxu0 0
    %178 = vmatpush1.bf16.msra.mxu0 %v157
    %179 = vmatprep.subr.bf16.mxu0 0
    %180 = vmatpush1.bf16.msra.mxu0 %v158
    %181 = vmatprep.subr.bf16.mxu0 0
    %182 = vmatpush1.bf16.msra.mxu0 %v159
    %183 = vmatprep.subr.bf16.mxu0 0
    %184 = vmatpush1.bf16.msra.mxu0 %v160
    %185 = vmatprep.subr.bf16.mxu0 0
    %186 = vmatpush1.bf16.msra.mxu0 0
    %187 = vmatprep.subr.bf16.mxu0 0
    %188 = vmatpush1.bf16.msra.mxu0 0
    %189 = vmatprep.subr.bf16.mxu0 0
    %190 = vmatpush1.bf16.msra.mxu0 0
    %191 = vmatprep.subr.bf16.mxu0 0
    %192 = vmatpush1.bf16.msra.mxu0 0
    %193 = vmatprep.subr.bf16.mxu0 0
    %194 = vmatpush1.bf16.msra.mxu0 0
    %195 = vmatprep.subr.bf16.mxu0 0
    %196 = vmatpush1.bf16.msra.mxu0 0
    %197 = vmatprep.subr.bf16.mxu0 0
    %198 = vmatpush1.bf16.msra.mxu0 0
    %199 = vmatprep.subr.bf16.mxu0 0
    %200 = vmatpush1.bf16.msra.mxu0 0
    %201 = vmatprep.mubr.bf16.mxu0 0
    %202 = vmatmul.mubr.bf16.gmra.mrb[0].mxu0 %v97
    %v203 = vpop.f32.mrb[0].mxu0
    %v204 = vadd.f32 %v119, %v203
    %v205 = vpop.f32.mrb[0].mxu0
    %v206 = vpop.f32.mrb[0].mxu0
    %v207 = vadd.f32 %v119, %v206
    %v208 = vpop.f32.mrb[0].mxu0
    %209 = vdwg.mxu0
    %v210 = vld [vmem:[%s3] sm:$0x1]
    %v211 = vld [vmem:[%s4] sm:$0x1]
    %212 = vadd.xlane.f32.xlu0 %v204
    %v213 = vpop.xlane.xlu0 %212
    %214 = vadd.xlane.f32.xlu0 %v207
    %v215 = vpop.xlane.xlu0 %214
    %v216 = vrcp.pop 128.0
    %v217 = vmul.f32 %v213, %v216
    %v218 = vmul.f32 %v215, %v216
    %v219 = vsub.f32 %v204, %v217
    %v220 = vsub.f32 %v207, %v218
    %v221 = vmul.f32 %v219, %v219
    %v222 = vmul.f32 %v220, %v220
    %223 = vadd.xlane.f32.xlu0 %v221
    %v224 = vpop.xlane.xlu0 %223
    %225 = vadd.xlane.f32.xlu0 %v222
    %v226 = vpop.xlane.xlu0 %225
    %v227 = vmul.f32 %v224, %v216
    %v228 = vmul.f32 %v226, %v216
    %v229 = vadd.f32 %v227, 1e-05
    %v230 = vadd.f32 %v228, 1e-05
    %v231 = vrsqrt.pop %v229
    %v232 = vrsqrt.pop %v230
    %v233 = vmul.f32 %v219, %v231
    %v234 = vmul.f32 %v220, %v232
    %v236 = vlaneseq
    %v237 = vshrl.u32 %v236, 7
    %v238 = vsub.s32 0, %v237
    %v239 = vrot.slane %v210, %v238
    %v241 = vmul.f32 %v233, %v239
    %v242 = vmul.f32 %v234, %v239
    %v244 = vlaneseq
    %v245 = vshrl.u32 %v244, 7
    %v246 = vsub.s32 0, %v245
    %v247 = vrot.slane %v211, %v246
    %v249 = vadd.f32 %v241, %v247
    %v250 = vadd.f32 %v242, %v247
    %v251 = vand.u32 2147483647, %v249
    %v252 = vand.u32 2147483647, %v250
    %v253 = vsub.f32 0.0, %v251
    %v254 = vsub.f32 0.0, %v252
    %v255 = vmul.f32 %v253, 1.442695
    %v256 = vpow.pop %v255
    %v257 = vmul.f32 %v254, 1.442695
    %v258 = vpow.pop %v257
    %v259 = vadd.f32 %v256, 1.0
    %v260 = vadd.f32 %v258, 1.0
    %vm261 = vcmp.ge.f32.partialorder %v249, 0.0
    %vm262 = vcmp.ge.f32.partialorder %v250, 0.0
    %v263 = vmul.f32 %v256, %v256
    %v264 = vmul.f32 %v258, %v258
    %v265 = vsel %vm261, %v263, 1.0
    %v266 = vsel %vm262, %v264, 1.0
    %v267 = vmul.f32 %v259, %v259
    %v268 = vmul.f32 %v260, %v260
    %v269 = vsub.f32 %v267, %v265
    %v270 = vsub.f32 %v268, %v266
    %v271 = vadd.f32 %v267, %v265
    %v272 = vadd.f32 %v268, %v266
    %v273 = vrcp.pop %v271
    %v274 = vrcp.pop %v272
    %v275 = vmul.f32 %v269, %v273
    %v276 = vmul.f32 %v270, %v274
    %v277 = vmul.f32 %v249, %v275
    %v278 = vmul.f32 %v250, %v276
    %v279 = vpack.c.bf16 %v278, %v277
    %v280 = vld [vmem:[#allocation7] sm:$0xf]
    %v281 = vld [vmem:[#allocation7 + $0x4] sm:$0xf]
    %v282 = vld [vmem:[#allocation7 + $0x8] sm:$0xf]
    %v283 = vld [vmem:[#allocation7 + $0xc] sm:$0xf]
    %v284 = vld [vmem:[#allocation7 + $0x10] sm:$0xf]
    %v285 = vld [vmem:[#allocation7 + $0x14] sm:$0xf]
    %v286 = vld [vmem:[#allocation7 + $0x18] sm:$0xf]
    %v287 = vld [vmem:[#allocation7 + $0x1c] sm:$0xf]
    %v288 = vld [vmem:[#allocation7 + $0x20] sm:$0xf]
    %v289 = vld [vmem:[#allocation7 + $0x24] sm:$0xf]
    %v290 = vld [vmem:[#allocation7 + $0x28] sm:$0xf]
    %v291 = vld [vmem:[#allocation7 + $0x2c] sm:$0xf]
    %v292 = vld [vmem:[#allocation7 + $0x30] sm:$0xf]
    %v293 = vld [vmem:[#allocation7 + $0x34] sm:$0xf]
    %v294 = vld [vmem:[#allocation7 + $0x38] sm:$0xf]
    %v295 = vld [vmem:[#allocation7 + $0x3c] sm:$0xf]
    %v296 = vld [vmem:[%s6] sm:$0x1]
    %v298 = vlaneseq
    %v299 = vshrl.u32 %v298, 7
    %v300 = vsub.s32 0, %v299
    %v301 = vrot.slane %v296, %v300
    %v319 = vunpack.c.l.b16 %v280
    %v320 = vunpack.c.l.b16 %v281
    %v321 = vunpack.c.l.b16 %v282
    %v322 = vunpack.c.l.b16 %v283
    %v323 = vunpack.c.l.b16 %v284
    %v324 = vunpack.c.l.b16 %v285
    %v325 = vunpack.c.l.b16 %v286
    %v326 = vunpack.c.l.b16 %v287
    %v327 = vunpack.c.l.b16 %v288
    %v328 = vunpack.c.l.b16 %v289
    %v329 = vunpack.c.l.b16 %v290
    %v330 = vunpack.c.l.b16 %v291
    %v331 = vunpack.c.l.b16 %v292
    %v332 = vunpack.c.l.b16 %v293
    %v333 = vunpack.c.l.b16 %v294
    %v334 = vunpack.c.l.b16 %v295
    %v335 = vpack.c.b16 %v320, %v319
    %v336 = vpack.c.b16 %v322, %v321
    %v337 = vpack.c.b16 %v324, %v323
    %v338 = vpack.c.b16 %v326, %v325
    %v339 = vpack.c.b16 %v328, %v327
    %v340 = vpack.c.b16 %v330, %v329
    %v341 = vpack.c.b16 %v332, %v331
    %v342 = vpack.c.b16 %v334, %v333
    %351 = vmatprep.subr.bf16.mxu0 0
    %352 = vmatpush1.bf16.msra.mxu0 %v335
    %353 = vmatprep.subr.bf16.mxu0 0
    %354 = vmatpush1.bf16.msra.mxu0 %v336
    %355 = vmatprep.subr.bf16.mxu0 0
    %356 = vmatpush1.bf16.msra.mxu0 %v337
    %357 = vmatprep.subr.bf16.mxu0 0
    %358 = vmatpush1.bf16.msra.mxu0 %v338
    %359 = vmatprep.subr.bf16.mxu0 0
    %360 = vmatpush1.bf16.msra.mxu0 %v339
    %361 = vmatprep.subr.bf16.mxu0 0
    %362 = vmatpush1.bf16.msra.mxu0 %v340
    %363 = vmatprep.subr.bf16.mxu0 0
    %364 = vmatpush1.bf16.msra.mxu0 %v341
    %365 = vmatprep.subr.bf16.mxu0 0
    %366 = vmatpush1.bf16.msra.mxu0 %v342
    %367 = vmatprep.subr.bf16.mxu0 0
    %368 = vmatpush1.bf16.msra.mxu0 0
    %369 = vmatprep.subr.bf16.mxu0 0
    %370 = vmatpush1.bf16.msra.mxu0 0
    %371 = vmatprep.subr.bf16.mxu0 0
    %372 = vmatpush1.bf16.msra.mxu0 0
    %373 = vmatprep.subr.bf16.mxu0 0
    %374 = vmatpush1.bf16.msra.mxu0 0
    %375 = vmatprep.subr.bf16.mxu0 0
    %376 = vmatpush1.bf16.msra.mxu0 0
    %377 = vmatprep.subr.bf16.mxu0 0
    %378 = vmatpush1.bf16.msra.mxu0 0
    %379 = vmatprep.subr.bf16.mxu0 0
    %380 = vmatpush1.bf16.msra.mxu0 0
    %381 = vmatprep.subr.bf16.mxu0 0
    %382 = vmatpush1.bf16.msra.mxu0 0
    %383 = vmatprep.mubr.bf16.mxu0 0
    %384 = vmatmul.mubr.bf16.gmra.mrb[0].mxu0 %v279
    %v385 = vpop.f32.mrb[0].mxu0
    %v386 = vadd.f32 %v301, %v385
    %v387 = vpop.f32.mrb[0].mxu0
    %v388 = vpop.f32.mrb[0].mxu0
    %v389 = vadd.f32 %v301, %v388
    %v390 = vpop.f32.mrb[0].mxu0
    %391 = vdwg.mxu0
    %v392 = vld [vmem:[%s7] sm:$0x1]
    %v393 = vld [vmem:[%s8] sm:$0x1]
    %394 = vadd.xlane.f32.xlu0 %v386
    %v395 = vpop.xlane.xlu0 %394
    %396 = vadd.xlane.f32.xlu0 %v389
    %v397 = vpop.xlane.xlu0 %396
    %v398 = vmul.f32 %v395, %v216
    %v399 = vmul.f32 %v397, %v216
    %v400 = vsub.f32 %v386, %v398
    %v401 = vsub.f32 %v389, %v399
    %v402 = vmul.f32 %v400, %v400
    %v403 = vmul.f32 %v401, %v401
    %404 = vadd.xlane.f32.xlu0 %v402
    %v405 = vpop.xlane.xlu0 %404
    %406 = vadd.xlane.f32.xlu0 %v403
    %v407 = vpop.xlane.xlu0 %406
    %v408 = vmul.f32 %v405, %v216
    %v409 = vmul.f32 %v407, %v216
    %v410 = vadd.f32 %v408, 1e-05
    %v411 = vadd.f32 %v409, 1e-05
    %v412 = vrsqrt.pop %v410
    %v413 = vrsqrt.pop %v411
    %v414 = vmul.f32 %v400, %v412
    %v415 = vmul.f32 %v401, %v413
    %v417 = vlaneseq
    %v418 = vshrl.u32 %v417, 7
    %v419 = vsub.s32 0, %v418
    %v420 = vrot.slane %v392, %v419
    %v422 = vmul.f32 %v414, %v420
    %v423 = vmul.f32 %v415, %v420
    %v425 = vlaneseq
    %v426 = vshrl.u32 %v425, 7
    %v427 = vsub.s32 0, %v426
    %v428 = vrot.slane %v393, %v427
    %v430 = vadd.f32 %v422, %v428
    %v431 = vadd.f32 %v423, %v428
    %v432 = vand.u32 2147483647, %v430
    %v433 = vand.u32 2147483647, %v431
    %v434 = vsub.f32 0.0, %v432
    %v435 = vsub.f32 0.0, %v433
    %v436 = vmul.f32 %v434, 1.442695
    %v437 = vpow.pop %v436
    %v438 = vmul.f32 %v435, 1.442695
    %v439 = vpow.pop %v438
    %v440 = vadd.f32 %v437, 1.0
    %v441 = vadd.f32 %v439, 1.0
    %vm442 = vcmp.ge.f32.partialorder %v430, 0.0
    %vm443 = vcmp.ge.f32.partialorder %v431, 0.0
    %v444 = vmul.f32 %v437, %v437
    %v445 = vmul.f32 %v439, %v439
    %v446 = vsel %vm442, %v444, 1.0
    %v447 = vsel %vm443, %v445, 1.0
    %v448 = vmul.f32 %v440, %v440
    %v449 = vmul.f32 %v441, %v441
    %v450 = vsub.f32 %v448, %v446
    %v451 = vsub.f32 %v449, %v447
    %v452 = vadd.f32 %v448, %v446
    %v453 = vadd.f32 %v449, %v447
    %v454 = vrcp.pop %v452
    %v455 = vrcp.pop %v453
    %v456 = vmul.f32 %v450, %v454
    %v457 = vmul.f32 %v451, %v455
    %v458 = vmul.f32 %v430, %v456
    %v459 = vmul.f32 %v431, %v457
    %v460 = vpack.c.bf16 %v459, %v458
    %v461 = vld [vmem:[#allocation8] sm:$0xf]
    %v462 = vld [vmem:[#allocation8 + $0x4] sm:$0xf]
    %v463 = vld [vmem:[#allocation8 + $0x8] sm:$0xf]
    %v464 = vld [vmem:[#allocation8 + $0xc] sm:$0xf]
    %v465 = vld [vmem:[#allocation8 + $0x10] sm:$0xf]
    %v466 = vld [vmem:[#allocation8 + $0x14] sm:$0xf]
    %v467 = vld [vmem:[#allocation8 + $0x18] sm:$0xf]
    %v468 = vld [vmem:[#allocation8 + $0x1c] sm:$0xf]
    %v469 = vld [vmem:[#allocation8 + $0x20] sm:$0xf]
    %v470 = vld [vmem:[#allocation8 + $0x24] sm:$0xf]
    %v471 = vld [vmem:[#allocation8 + $0x28] sm:$0xf]
    %v472 = vld [vmem:[#allocation8 + $0x2c] sm:$0xf]
    %v473 = vld [vmem:[#allocation8 + $0x30] sm:$0xf]
    %v474 = vld [vmem:[#allocation8 + $0x34] sm:$0xf]
    %v475 = vld [vmem:[#allocation8 + $0x38] sm:$0xf]
    %v476 = vld [vmem:[#allocation8 + $0x3c] sm:$0xf]
    %v477 = vld [vmem:[%s10] sm:$0x1]
    %v479 = vlaneseq
    %v480 = vshrl.u32 %v479, 7
    %v481 = vsub.s32 0, %v480
    %v482 = vrot.slane %v477, %v481
    %v500 = vunpack.c.l.b16 %v461
    %v501 = vunpack.c.l.b16 %v462
    %v502 = vunpack.c.l.b16 %v463
    %v503 = vunpack.c.l.b16 %v464
    %v504 = vunpack.c.l.b16 %v465
    %v505 = vunpack.c.l.b16 %v466
    %v506 = vunpack.c.l.b16 %v467
    %v507 = vunpack.c.l.b16 %v468
    %v508 = vunpack.c.l.b16 %v469
    %v509 = vunpack.c.l.b16 %v470
    %v510 = vunpack.c.l.b16 %v471
    %v511 = vunpack.c.l.b16 %v472
    %v512 = vunpack.c.l.b16 %v473
    %v513 = vunpack.c.l.b16 %v474
    %v514 = vunpack.c.l.b16 %v475
    %v515 = vunpack.c.l.b16 %v476
    %v516 = vpack.c.b16 %v501, %v500
    %v517 = vpack.c.b16 %v503, %v502
    %v518 = vpack.c.b16 %v505, %v504
    %v519 = vpack.c.b16 %v507, %v506
    %v520 = vpack.c.b16 %v509, %v508
    %v521 = vpack.c.b16 %v511, %v510
    %v522 = vpack.c.b16 %v513, %v512
    %v523 = vpack.c.b16 %v515, %v514
    %532 = vmatprep.subr.bf16.mxu0 0
    %533 = vmatpush1.bf16.msra.mxu0 %v516
    %534 = vmatprep.subr.bf16.mxu0 0
    %535 = vmatpush1.bf16.msra.mxu0 %v517
    %536 = vmatprep.subr.bf16.mxu0 0
    %537 = vmatpush1.bf16.msra.mxu0 %v518
    %538 = vmatprep.subr.bf16.mxu0 0
    %539 = vmatpush1.bf16.msra.mxu0 %v519
    %540 = vmatprep.subr.bf16.mxu0 0
    %541 = vmatpush1.bf16.msra.mxu0 %v520
    %542 = vmatprep.subr.bf16.mxu0 0
    %543 = vmatpush1.bf16.msra.mxu0 %v521
    %544 = vmatprep.subr.bf16.mxu0 0
    %545 = vmatpush1.bf16.msra.mxu0 %v522
    %546 = vmatprep.subr.bf16.mxu0 0
    %547 = vmatpush1.bf16.msra.mxu0 %v523
    %548 = vmatprep.subr.bf16.mxu0 0
    %549 = vmatpush1.bf16.msra.mxu0 0
    %550 = vmatprep.subr.bf16.mxu0 0
    %551 = vmatpush1.bf16.msra.mxu0 0
    %552 = vmatprep.subr.bf16.mxu0 0
    %553 = vmatpush1.bf16.msra.mxu0 0
    %554 = vmatprep.subr.bf16.mxu0 0
    %555 = vmatpush1.bf16.msra.mxu0 0
    %556 = vmatprep.subr.bf16.mxu0 0
    %557 = vmatpush1.bf16.msra.mxu0 0
    %558 = vmatprep.subr.bf16.mxu0 0
    %559 = vmatpush1.bf16.msra.mxu0 0
    %560 = vmatprep.subr.bf16.mxu0 0
    %561 = vmatpush1.bf16.msra.mxu0 0
    %562 = vmatprep.subr.bf16.mxu0 0
    %563 = vmatpush1.bf16.msra.mxu0 0
    %564 = vmatprep.mubr.bf16.mxu0 0
    %565 = vmatmul.mubr.bf16.gmra.mrb[0].mxu0 %v460
    %v566 = vpop.f32.mrb[0].mxu0
    %v567 = vadd.f32 %v482, %v566
    %v568 = vpop.f32.mrb[0].mxu0
    %v569 = vpop.f32.mrb[0].mxu0
    %v570 = vadd.f32 %v482, %v569
    %v571 = vpop.f32.mrb[0].mxu0
    %572 = vdwg.mxu0
    %v573 = vpack.c.bf16 %v570, %v567
    %v575 = vunpack.c.l.b16 %v573
    %v576 = vunpack.c.h.b16 %v573
    %v577 = vpack.c.b16 %v575, %v575
    %v578 = vpack.c.b16 %v576, %v576
    %581 = vst [vmem:[#allocation10] sm:$0xf] %v577
    %582 = vst [vmem:[#allocation10 + $0x4] sm:$0xf] %v578
    // Predicated region
    $region62: #{tpu_custom_call.1} parent=1 // pred_check
      _
    $region63: #{tpu_custom_call.1} parent=1 // pred_check_branch
      %584 = sbr.rel (0) target = $region65
    $region64: #{tpu_custom_call.1} parent=1 // pred_region
      %s586 = ssub.s32 128, 64
      %587 = vsyncadd [#allocation4], %s586
      %s588 = sshll.u32 [#allocation10], 4
      %s589 = int_to_ptr.vmem [resolvable:$true] %s588
      %594 = dma.vmem_to_hbm [thread:$0]  %s589, 64, %s11, [#allocation4], 64, 64, 4
    $region65: #{tpu_custom_call.1} parent=1 // pred_fallthru
      _
    // Predicated region
    $region66: #{tpu_custom_call.1} parent=1 // pred_check
      _
    $region67: #{tpu_custom_call.1} parent=1 // pred_check_branch
      %596 = sbr.rel (0) target = $region69
    $region68: #{tpu_custom_call.1} parent=1 // pred_region
      %597 = dma.done [#allocation4], 128
    $region69: #{tpu_custom_call.1} parent=1 // pred_fallthru
      _
    %598 = vsyncpa [#allocation3], 1
    %599 = vsyncpa [#allocation6], 1
    %600 = vsyncpa [#allocation9], 1
    %601 = vsyncpa [#allocation4], 1

</llo_original>
